<compile_context>
chip_gen: v7x
topology: tpu7x:2x2x1
jax: 0.10.0
libtpu: 0.0.40
codegen_flags: <defaults>
</compile_context>

<pallas_src>
import math

import numpy as np
import jax
import jax.numpy as jnp
from jax.experimental import pallas as pl
from jax.experimental.pallas import tpu as pltpu

HIDDEN = 512
LANE = 128
SUBLANE = 8          # f32 sublane group
TILE_GRAN = 16       # bf16 sublane-pack granularity (output tile rows)
MAX_TB = 512         # batch-tile cap; ~85% of HBM roofline territory, VMEM-safe
MIN_TILES = 2        # give both v7x TensorCores work when the batch allows


def _round_up(x, m):
    return (x + m - 1) // m * m


def _cdiv(a, b):
    return -(-a // b)


def _actor_kernel(state_ref, w1_ref, w2_ref, w3_ref, b12_ref, epi_ref, out_ref):
    # x: [TB, S] f32 -> bf16 operands for the MXU; all accumulation in f32.
    x = state_ref[...].astype(jnp.bfloat16)

    b12 = b12_ref[...]                      # (2, HIDDEN) f32: rows = b1, b2
    epi = epi_ref[...]                      # (4, out_pad) f32: b3, scale, keep, offset
    b1, b2 = b12[0:1, :], b12[1:2, :]
    b3, scale, keep, offset = epi[0:1, :], epi[1:2, :], epi[2:3, :], epi[3:4, :]

    h1 = jnp.dot(x, w1_ref[...], preferred_element_type=jnp.float32) + b1
    h1 = jnp.maximum(h1, 0.0).astype(jnp.bfloat16)

    h2 = jnp.dot(h1, w2_ref[...], preferred_element_type=jnp.float32) + b2
    h2 = jnp.maximum(h2, 0.0).astype(jnp.bfloat16)

    a = jnp.dot(h2, w3_ref[...], preferred_element_type=jnp.float32) + b3

    # Branchless column-wise epilogue (no iota / selects):
    #   col 0      : (tanh(a)+1)/2 * limit_v   (scale = limit_v/2, offset = limit_v/2)
    #   col 1      :  tanh(a)      * limit_w   (scale = limit_w)
    #   col 2..A-1 :  raw logits               (keep = 1, matches PyTorch)
    #   padded cols:  0                        (scale = keep = offset = 0)
    out = jnp.tanh(a) * scale + a * keep + offset
    out_ref[...] = out.astype(out_ref.dtype)


def xavier_uniform(key, fan_in, fan_out):
    limit = math.sqrt(6.0 / (fan_in + fan_out))
    # stored as [in, out] so the kernel does x @ W
    return jax.random.uniform(key, (fan_in, fan_out), jnp.float32,
                              minval=-limit, maxval=limit)


def init_actor_params(key, state_dim, action_dim):
    """f32 'master' params, matching the PyTorch init."""
    k1, k2, k3 = jax.random.split(key, 3)
    w1 = xavier_uniform(k1, state_dim, HIDDEN)
    b1 = jnp.full((1, HIDDEN), 0.01, jnp.float32)
    w2 = xavier_uniform(k2, HIDDEN, HIDDEN)
    b2 = jnp.full((1, HIDDEN), 0.01, jnp.float32)
    w3 = xavier_uniform(k3, HIDDEN, action_dim)
    b3 = jnp.full((1, action_dim), 0.01, jnp.float32)
    return (w1, b1, w2, b2, w3, b3)


def prepare_actor_params(params_f32, action_dim, action_limit_v, action_limit_w):
    """Cast weights to bf16, pad the last layer to 128 output lanes, and pack
    the biases / per-column epilogue constants into two small f32 arrays."""
    assert action_dim >= 2, "module indexes action[0] and action[1]"
    w1, b1, w2, b2, w3, b3 = params_f32
    out_pad = _round_up(max(action_dim, LANE), LANE)

    w3p = jnp.zeros((HIDDEN, out_pad), jnp.float32).at[:, :action_dim].set(w3)
    b3p = np.zeros((1, out_pad), np.float32)
    b3p[:, :action_dim] = np.asarray(b3)

    scale = np.zeros((1, out_pad), np.float32)
    keep = np.zeros((1, out_pad), np.float32)
    offset = np.zeros((1, out_pad), np.float32)
    scale[0, 0] = 0.5 * float(action_limit_v)
    offset[0, 0] = 0.5 * float(action_limit_v)
    scale[0, 1] = float(action_limit_w)
    if action_dim > 2:
        keep[0, 2:action_dim] = 1.0   # columns >= 2 keep raw logits (PyTorch behavior)

    b12 = jnp.concatenate([b1, b2], axis=0)                       # (2, HIDDEN)
    epi = jnp.asarray(np.concatenate([b3p, scale, keep, offset], axis=0))  # (4, out_pad)

    return dict(
        w1=w1.astype(jnp.bfloat16),
        w2=w2.astype(jnp.bfloat16),
        w3=w3p.astype(jnp.bfloat16),
        b12=b12, epi=epi,
        action_dim=action_dim, out_pad=out_pad,
    )


def _choose_tiling(B):
    """Pick (TB, B_pad): batch tile and padded batch.

    - Batch is padded to a sublane group first (waste <= 7 rows), never to a
      full tile as before.
    - For batches past one packing group the grid gets >= MIN_TILES steps so
      both v7x TensorCores have work; TB is capped at MAX_TB and kept a
      multiple of the bf16 packing granularity so multi-tile output blocks
      stay layout-friendly. Total padding waste <= ~16 * n_tiles rows.
    """
    B8 = _round_up(max(B, 1), SUBLANE)
    if B8 <= TILE_GRAN:
        return B8, B8                       # tiny / online batch: single tile
    n_tiles = max(MIN_TILES, _cdiv(B8, MAX_TB))
    TB = _round_up(_cdiv(B8, n_tiles), TILE_GRAN)
    B_pad = _round_up(B8, TB)
    return TB, B_pad


def actor_forward(state, prepared):
    """state: [B, state_dim] or [state_dim]. Returns [B, action_dim] or [action_dim]."""
    squeeze_out = state.ndim == 1
    if squeeze_out:                       # PyTorch 1-D branch: batch of 1
        state = state[None, :]

    B, S = state.shape
    action_dim = prepared["action_dim"]
    out_pad = prepared["out_pad"]

    TB, B_pad = _choose_tiling(B)
    if B_pad != B:
        state = jnp.pad(state, ((0, B_pad - B), (0, 0)))
    grid = (B_pad // TB,)

    const = lambda i: (0, 0)              # weights/biases: same block every step
    out = pl.pallas_call(
        _actor_kernel,
        out_shape=jax.ShapeDtypeStruct((B_pad, out_pad), jnp.bfloat16),
        grid=grid,
        in_specs=[
            pl.BlockSpec((TB, S), lambda i: (i, 0)),        # state
            pl.BlockSpec((S, HIDDEN), const),               # w1 (bf16)
            pl.BlockSpec((HIDDEN, HIDDEN), const),          # w2 (bf16)
            pl.BlockSpec((HIDDEN, out_pad), const),         # w3 (bf16, padded)
            pl.BlockSpec((2, HIDDEN), const),               # b1/b2 stacked (f32)
            pl.BlockSpec((4, out_pad), const),              # b3/scale/keep/offset (f32)
        ],
        out_specs=pl.BlockSpec((TB, out_pad), lambda i: (i, 0)),
        compiler_params=pltpu.CompilerParams(
            dimension_semantics=("parallel",)),             # v7x: shard batch over 2 TCs
    )(state, prepared["w1"], prepared["w2"], prepared["w3"],
      prepared["b12"], prepared["epi"])

    # Valid window only; consumers needing the padded bf16 slab can skip this.
    out = out[:B, :action_dim].astype(jnp.float32)
    if squeeze_out:
        out = out[0]
    return out


# ---------------- references for the correctness check ----------------

def _reference_forward_bf16(state, prepared):
    """Mirrors the kernel's numerics (bf16 operands, f32 accumulation, bf16 out)."""
    w1, w2, w3 = prepared["w1"], prepared["w2"], prepared["w3"]
    b12, epi = prepared["b12"], prepared["epi"]
    action_dim = prepared["action_dim"]
    x = state.astype(jnp.bfloat16)
    h1 = jnp.maximum(jnp.dot(x, w1, preferred_element_type=jnp.float32) + b12[0:1], 0.0)
    h2 = jnp.maximum(jnp.dot(h1.astype(jnp.bfloat16), w2,
                             preferred_element_type=jnp.float32) + b12[1:2], 0.0)
    a = jnp.dot(h2.astype(jnp.bfloat16), w3,
                preferred_element_type=jnp.float32) + epi[0:1]
    out = jnp.tanh(a) * epi[1:2] + a * epi[2:3] + epi[3:4]
    out = out.astype(jnp.bfloat16).astype(jnp.float32)
    return out[:, :action_dim]


def _reference_forward_f32(state, params_f32, action_limit_v, action_limit_w):
    """Pure-f32 reference (the original PyTorch semantics)."""
    w1, b1, w2, b2, w3, b3 = params_f32
    h1 = jnp.maximum(state @ w1 + b1, 0.0)
    h2 = jnp.maximum(h1 @ w2 + b2, 0.0)
    a = h2 @ w3 + b3
    t = jnp.tanh(a)
    out = a.at[:, 0].set((t[:, 0] + 1.0) * 0.5 * action_limit_v)
    out = out.at[:, 1].set(t[:, 1] * action_limit_w)
    return out


if __name__ == "__main__":
    state_dim = 16
    action_dim = 2
    batch = 2
    action_limit_v = 0.25
    action_limit_w = 0.25

    key = jax.random.PRNGKey(0)
    kp, ks, kb = jax.random.split(key, 3)
    params_f32 = init_actor_params(kp, state_dim, action_dim)
    prepared = prepare_actor_params(params_f32, action_dim,
                                    action_limit_v, action_limit_w)
    state = jax.random.normal(ks, (batch, state_dim), jnp.float32)

    # batched path (single tile)
    action = jax.block_until_ready(actor_forward(state, prepared))
    assert action.shape == (batch, action_dim)

    ref_bf16 = _reference_forward_bf16(state, prepared)
    assert jnp.allclose(action, ref_bf16, atol=5e-3, rtol=5e-3), "mismatch vs bf16 ref"

    ref_f32 = _reference_forward_f32(state, params_f32, action_limit_v, action_limit_w)
    assert jnp.allclose(action, ref_f32, atol=5e-2, rtol=5e-2), "mismatch vs f32 ref"

    # single-state (1-D) path, matching the PyTorch squeeze(0) branch
    a1 = jax.block_until_ready(actor_forward(state[0], prepared))
    assert a1.shape == (action_dim,)
    assert jnp.allclose(a1, action[0], atol=1e-6, rtol=1e-6)

    # multi-tile path: exercises the >=2-step grid, batch padding and tail rows
    state_big = jax.random.normal(kb, (20, state_dim), jnp.float32)
    action_big = jax.block_until_ready(actor_forward(state_big, prepared))
    assert action_big.shape == (20, action_dim)
    ref_big = _reference_forward_bf16(state_big, prepared)
    assert jnp.allclose(action_big, ref_big, atol=5e-3, rtol=5e-3), "mismatch (multi-tile)"

    print("KERNEL_OK")
</pallas_src>

<mosaic_0001>
module attributes {stable_mosaic.version = 11 : i64} {
  func.func @_actor_kernel(%arg0: i32, %arg1: memref<8x16xf32, #tpu.memory_space<vmem>>, %arg2: memref<16x512xbf16, #tpu.memory_space<vmem>>, %arg3: memref<512x512xbf16, #tpu.memory_space<vmem>>, %arg4: memref<512x128xbf16, #tpu.memory_space<vmem>>, %arg5: memref<2x512xf32, #tpu.memory_space<vmem>>, %arg6: memref<4x128xf32, #tpu.memory_space<vmem>>, %arg7: memref<8x128xbf16, #tpu.memory_space<vmem>>) attributes {dimension_semantics = [#tpu.dimension_semantics<parallel>], iteration_bounds = array<i64: 1>, scalar_prefetch = 0 : i64, scratch_operands = 0 : i64, tpu.core_type = #tpu.core_type<tc>, window_params = [{transform_indices = @transform_0, window_bounds = array<i64: 8, 16>}, {pipeline_mode = #tpu.pipeline_mode<synchronous>, transform_indices = @transform_1, window_bounds = array<i64: 16, 512>}, {pipeline_mode = #tpu.pipeline_mode<synchronous>, transform_indices = @transform_2, window_bounds = array<i64: 512, 512>}, {pipeline_mode = #tpu.pipeline_mode<synchronous>, transform_indices = @transform_3, window_bounds = array<i64: 512, 128>}, {pipeline_mode = #tpu.pipeline_mode<synchronous>, transform_indices = @transform_4, window_bounds = array<i64: 2, 512>}, {pipeline_mode = #tpu.pipeline_mode<synchronous>, transform_indices = @transform_5, window_bounds = array<i64: 4, 128>}, {transform_indices = @transform_6, window_bounds = array<i64: 8, 128>}]} {
    %c0 = arith.constant 0 : index
    %c0_0 = arith.constant 0 : index
    %0 = vector.load %arg1[%c0, %c0_0] : memref<8x16xf32, #tpu.memory_space<vmem>>, vector<8x16xf32>
    %1 = arith.truncf %0 : vector<8x16xf32> to vector<8x16xbf16>
    %c0_1 = arith.constant 0 : index
    %c0_2 = arith.constant 0 : index
    %2 = vector.load %arg5[%c0_1, %c0_2] : memref<2x512xf32, #tpu.memory_space<vmem>>, vector<2x512xf32>
    %c0_3 = arith.constant 0 : index
    %c0_4 = arith.constant 0 : index
    %3 = vector.load %arg6[%c0_3, %c0_4] : memref<4x128xf32, #tpu.memory_space<vmem>>, vector<4x128xf32>
    %4 = vector.extract_strided_slice %2 {offsets = [0, 0], sizes = [1, 512], strides = [1, 1]} : vector<2x512xf32> to vector<1x512xf32>
    %5 = vector.extract_strided_slice %2 {offsets = [1, 0], sizes = [1, 512], strides = [1, 1]} : vector<2x512xf32> to vector<1x512xf32>
    %6 = vector.extract_strided_slice %3 {offsets = [0, 0], sizes = [1, 128], strides = [1, 1]} : vector<4x128xf32> to vector<1x128xf32>
    %7 = vector.extract_strided_slice %3 {offsets = [1, 0], sizes = [1, 128], strides = [1, 1]} : vector<4x128xf32> to vector<1x128xf32>
    %8 = vector.extract_strided_slice %3 {offsets = [2, 0], sizes = [1, 128], strides = [1, 1]} : vector<4x128xf32> to vector<1x128xf32>
    %9 = vector.extract_strided_slice %3 {offsets = [3, 0], sizes = [1, 128], strides = [1, 1]} : vector<4x128xf32> to vector<1x128xf32>
    %c0_5 = arith.constant 0 : index
    %c0_6 = arith.constant 0 : index
    %10 = vector.load %arg2[%c0_5, %c0_6] : memref<16x512xbf16, #tpu.memory_space<vmem>>, vector<16x512xbf16>
    %cst = arith.constant dense<0.000000e+00> : vector<8x512xf32>
    %11 = tpu.matmul %1, %10, %cst {dimension_numbers = #tpu.dot_dimension_numbers<[1], [0], [0], [1], [0, 0, 1, 1], [], []>} : vector<8x16xbf16>, vector<16x512xbf16>, vector<8x512xf32> -> vector<8x512xf32>
    %12 = vector.broadcast %4 : vector<1x512xf32> to vector<8x512xf32>
    %13 = arith.addf %11, %12 : vector<8x512xf32>
    %cst_7 = arith.constant 0.000000e+00 : f32
    %14 = vector.broadcast %cst_7 : f32 to vector<8x512xf32>
    %15 = arith.maximumf %13, %14 : vector<8x512xf32>
    %16 = arith.truncf %15 : vector<8x512xf32> to vector<8x512xbf16>
    %c0_8 = arith.constant 0 : index
    %c0_9 = arith.constant 0 : index
    %17 = vector.load %arg3[%c0_8, %c0_9] : memref<512x512xbf16, #tpu.memory_space<vmem>>, vector<512x512xbf16>
    %cst_10 = arith.constant dense<0.000000e+00> : vector<8x512xf32>
    %18 = tpu.matmul %16, %17, %cst_10 {dimension_numbers = #tpu.dot_dimension_numbers<[1], [0], [0], [1], [0, 0, 1, 1], [], []>} : vector<8x512xbf16>, vector<512x512xbf16>, vector<8x512xf32> -> vector<8x512xf32>
    %19 = vector.broadcast %5 : vector<1x512xf32> to vector<8x512xf32>
    %20 = arith.addf %18, %19 : vector<8x512xf32>
    %cst_11 = arith.constant 0.000000e+00 : f32
    %21 = vector.broadcast %cst_11 : f32 to vector<8x512xf32>
    %22 = arith.maximumf %20, %21 : vector<8x512xf32>
    %23 = arith.truncf %22 : vector<8x512xf32> to vector<8x512xbf16>
    %c0_12 = arith.constant 0 : index
    %c0_13 = arith.constant 0 : index
    %24 = vector.load %arg4[%c0_12, %c0_13] : memref<512x128xbf16, #tpu.memory_space<vmem>>, vector<512x128xbf16>
    %cst_14 = arith.constant dense<0.000000e+00> : vector<8x128xf32>
    %25 = tpu.matmul %23, %24, %cst_14 {dimension_numbers = #tpu.dot_dimension_numbers<[1], [0], [0], [1], [0, 0, 1, 1], [], []>} : vector<8x512xbf16>, vector<512x128xbf16>, vector<8x128xf32> -> vector<8x128xf32>
    %26 = vector.broadcast %6 : vector<1x128xf32> to vector<8x128xf32>
    %27 = arith.addf %25, %26 : vector<8x128xf32>
    %28 = math.tanh %27 : vector<8x128xf32>
    %29 = vector.broadcast %7 : vector<1x128xf32> to vector<8x128xf32>
    %30 = arith.mulf %28, %29 : vector<8x128xf32>
    %31 = vector.broadcast %8 : vector<1x128xf32> to vector<8x128xf32>
    %32 = arith.mulf %27, %31 : vector<8x128xf32>
    %33 = arith.addf %30, %32 : vector<8x128xf32>
    %34 = vector.broadcast %9 : vector<1x128xf32> to vector<8x128xf32>
    %35 = arith.addf %33, %34 : vector<8x128xf32>
    %36 = arith.truncf %35 : vector<8x128xf32> to vector<8x128xbf16>
    %c0_15 = arith.constant 0 : index
    %c0_16 = arith.constant 0 : index
    %37 = vector.load %arg7[%c0_15, %c0_16] : memref<8x128xbf16, #tpu.memory_space<vmem>>, vector<8x128xbf16>
    tpu.vector_store %arg7[%c0_15, %c0_16], %36 {strides = array<i32>} : memref<8x128xbf16, #tpu.memory_space<vmem>>, vector<8x128xbf16>,
    return
  }
  func.func @transform_0(%arg0: i32) -> (i32, i32) {
    %c0_i32 = arith.constant 0 : i32
    %c0_i32_0 = arith.constant 0 : i32
    return %arg0, %c0_i32 : i32, i32
  }
  func.func @transform_1(%arg0: i32) -> (i32, i32) {
    %c0_i32 = arith.constant 0 : i32
    %c0_i32_0 = arith.constant 0 : i32
    %c0_i32_1 = arith.constant 0 : i32
    return %c0_i32, %c0_i32_0 : i32, i32
  }
  func.func @transform_2(%arg0: i32) -> (i32, i32) {
    %c0_i32 = arith.constant 0 : i32
    %c0_i32_0 = arith.constant 0 : i32
    %c0_i32_1 = arith.constant 0 : i32
    return %c0_i32, %c0_i32_0 : i32, i32
  }
  func.func @transform_3(%arg0: i32) -> (i32, i32) {
    %c0_i32 = arith.constant 0 : i32
    %c0_i32_0 = arith.constant 0 : i32
    %c0_i32_1 = arith.constant 0 : i32
    return %c0_i32, %c0_i32_0 : i32, i32
  }
  func.func @transform_4(%arg0: i32) -> (i32, i32) {
    %c0_i32 = arith.constant 0 : i32
    %c0_i32_0 = arith.constant 0 : i32
    %c0_i32_1 = arith.constant 0 : i32
    return %c0_i32, %c0_i32_0 : i32, i32
  }
  func.func @transform_5(%arg0: i32) -> (i32, i32) {
    %c0_i32 = arith.constant 0 : i32
    %c0_i32_0 = arith.constant 0 : i32
    %c0_i32_1 = arith.constant 0 : i32
    return %c0_i32, %c0_i32_0 : i32, i32
  }
  func.func @transform_6(%arg0: i32) -> (i32, i32) {
    %c0_i32 = arith.constant 0 : i32
    %c0_i32_0 = arith.constant 0 : i32
    return %arg0, %c0_i32 : i32, i32
  }
}

</mosaic_0001>

<llo_original>
// kernel: tpu_custom_call.1
$region0: #{tpu_custom_call.1}
  #allocation0 [shape = 'u32[]', space=smem, size = 0x4, offset = 0x4, fixed_abs, tag = 'smem constant byte address 0x4 - core index']
  #allocation1 [shape = 'u32[144,128]{1,0:T(1,128)}', space=vmem, size = 0x12000, scoped, tag = 'internal scratch']
  %s0 = inlined_call_operand.hbm [shape: f32[8,16], index: 0, kind: input, shape index: {}]
  %s1 = inlined_call_operand.hbm [shape: bf16[16,512], index: 1, kind: input, shape index: {}]
  %s2 = inlined_call_operand.hbm [shape: bf16[512,512], index: 2, kind: input, shape index: {}]
  %s3 = inlined_call_operand.hbm [shape: bf16[512,128], index: 3, kind: input, shape index: {}]
  %s4 = inlined_call_operand.vmem [shape: f32[2,512], index: 4, kind: input, shape index: {}]
  %s5 = inlined_call_operand.vmem [shape: f32[4,128], index: 5, kind: input, shape index: {}]
  %s6 = inlined_call_operand.hbm [shape: bf16[8,128], index: 6, kind: output, shape index: {}]
  %s7 = sld [smem:[#allocation0]]
  $region50: #{tpu_custom_call.1} parent=0
    _
  %s9 = ssub.s32 1, %s7
  %s10 = scalar_select 0, %s9, %s7
  $region1: #{tpu_custom_call.1} parent=0
    #allocation2 [shape = 'u8[4096]{0}', space=vmem, size = 0x1000, scoped, tag = 'input window, operand 0, single buffered']
    #allocation3 [shape = 's32[1]{0}', space=sflag, size = 0x4, scoped, tag = 'scoped memory for tpu_custom_call.1']
    #allocation4 [shape = 's32[1]{0}', space=sflag, size = 0x4, scoped, tag = 'scoped memory for tpu_custom_call.1']
    #allocation5 [shape = 'u8[16384]{0}', space=vmem, size = 0x4000, scoped, tag = 'input window, operand 1, single buffered']
    #allocation6 [shape = 's32[1]{0}', space=sflag, size = 0x4, scoped, tag = 'scoped memory for tpu_custom_call.1']
    #allocation7 [shape = 'u8[524288]{0}', space=vmem, size = 0x80000, scoped, tag = 'input window, operand 2, single buffered']
    #allocation8 [shape = 'u8[131072]{0}', space=vmem, size = 0x20000, scoped, tag = 'input window, operand 3, single buffered']
    #allocation9 [shape = 's32[1]{0}', space=sflag, size = 0x4, scoped, tag = 'scoped memory for tpu_custom_call.1']
    #allocation10 [shape = 'u8[2048]{0}', space=vmem, size = 0x800, scoped, tag = 'output window, operand 0, single buffered']
    %11 = vsyncpa [#allocation3], 0
    %12 = vsyncpa [#allocation6], 0
    %13 = vsyncpa [#allocation9], 0
    %14 = vsyncpa [#allocation4], 0
    // Predicated region
    $region2: #{tpu_custom_call.1} parent=1 // pred_check
      _
    $region3: #{tpu_custom_call.1} parent=1 // pred_check_branch
      %16 = sbr.rel (0) target = $region5
    $region4: #{tpu_custom_call.1} parent=1 // pred_region
      %s18 = ssub.s32 128, 128
      %19 = vsyncadd [#allocation3], %s18
      %s21 = sshll.u32 [#allocation2], 4
      %s22 = int_to_ptr.vmem [resolvable:$true] %s21
      %24 = dma.hbm_to_vmem [thread:$0]  %s0, 128, %s22, [#allocation3]
    $region5: #{tpu_custom_call.1} parent=1 // pred_fallthru
      _
    // Predicated region
    $region6: #{tpu_custom_call.1} parent=1 // pred_check
      _
    $region7: #{tpu_custom_call.1} parent=1 // pred_check_branch
      %26 = sbr.rel (0) target = $region9
    $region8: #{tpu_custom_call.1} parent=1 // pred_region
      %s28 = ssub.s32 512, 512
      %29 = vsyncadd [#allocation6], %s28
      %s30 = sshll.u32 [#allocation5], 4
      %s31 = int_to_ptr.vmem [resolvable:$true] %s30
      %36 = dma.hbm_to_vmem [thread:$0]  %s1, 512, %s31, [#allocation6], 256, 256, 16
    $region9: #{tpu_custom_call.1} parent=1 // pred_fallthru
      _
    // Predicated region
    $region10: #{tpu_custom_call.1} parent=1 // pred_check
      _
    $region11: #{tpu_custom_call.1} parent=1 // pred_check_branch
      %38 = sbr.rel (0) target = $region13
    $region12: #{tpu_custom_call.1} parent=1 // pred_region
      %s40 = ssub.s32 16384, 16384
      %41 = vsyncadd [#allocation6], %s40
      %s42 = sshll.u32 [#allocation7], 4
      %s43 = int_to_ptr.vmem [resolvable:$true] %s42
      %48 = dma.hbm_to_vmem [thread:$0]  %s2, 16384, %s43, [#allocation6], 256, 256, 16
    $region13: #{tpu_custom_call.1} parent=1 // pred_fallthru
      _
    // Predicated region
    $region14: #{tpu_custom_call.1} parent=1 // pred_check
      _
    $region15: #{tpu_custom_call.1} parent=1 // pred_check_branch
      %50 = sbr.rel (0) target = $region17
    $region16: #{tpu_custom_call.1} parent=1 // pred_region
      %s52 = ssub.s32 4096, 4096
      %53 = vsyncadd [#allocation9], %s52
      %s54 = sshll.u32 [#allocation8], 4
      %s55 = int_to_ptr.vmem [resolvable:$true] %s54
      %60 = dma.hbm_to_vmem [thread:$0]  %s3, 4096, %s55, [#allocation9], 64, 64, 4
    $region17: #{tpu_custom_call.1} parent=1 // pred_fallthru
      _
    // Predicated region
    $region18: #{tpu_custom_call.1} parent=1 // pred_check
      _
    $region19: #{tpu_custom_call.1} parent=1 // pred_check_branch
      %62 = sbr.rel (0) target = $region21
    $region20: #{tpu_custom_call.1} parent=1 // pred_region
      _
    $region21: #{tpu_custom_call.1} parent=1 // pred_fallthru
      _
    // Predicated region
    $region22: #{tpu_custom_call.1} parent=1 // pred_check
      _
    $region23: #{tpu_custom_call.1} parent=1 // pred_check_branch
      %64 = sbr.rel (0) target = $region25
    $region24: #{tpu_custom_call.1} parent=1 // pred_region
      _
    $region25: #{tpu_custom_call.1} parent=1 // pred_fallthru
      _
    // Predicated region
    $region26: #{tpu_custom_call.1} parent=1 // pred_check
      _
    $region27: #{tpu_custom_call.1} parent=1 // pred_check_branch
      %66 = sbr.rel (0) target = $region29
    $region28: #{tpu_custom_call.1} parent=1 // pred_region
      %67 = dma.done [#allocation3], 128
    $region29: #{tpu_custom_call.1} parent=1 // pred_fallthru
      _
    // Predicated region
    $region30: #{tpu_custom_call.1} parent=1 // pred_check
      _
    $region31: #{tpu_custom_call.1} parent=1 // pred_check_branch
      %69 = sbr.rel (0) target = $region33
    $region32: #{tpu_custom_call.1} parent=1 // pred_region
      %70 = dma.done [#allocation6], 512
    $region33: #{tpu_custom_call.1} parent=1 // pred_fallthru
      _
    // Predicated region
    $region34: #{tpu_custom_call.1} parent=1 // pred_check
      _
    $region35: #{tpu_custom_call.1} parent=1 // pred_check_branch
      %72 = sbr.rel (0) target = $region37
    $region36: #{tpu_custom_call.1} parent=1 // pred_region
      %73 = dma.done [#allocation6], 16384
    $region37: #{tpu_custom_call.1} parent=1 // pred_fallthru
      _
    // Predicated region
    $region38: #{tpu_custom_call.1} parent=1 // pred_check
      _
    $region39: #{tpu_custom_call.1} parent=1 // pred_check_branch
      %75 = sbr.rel (0) target = $region41
    $region40: #{tpu_custom_call.1} parent=1 // pred_region
      %76 = dma.done [#allocation9], 4096
    $region41: #{tpu_custom_call.1} parent=1 // pred_fallthru
      _
    %v78 = vld [vmem:[#allocation2] sm:$0xff]
    %v79 = vpack.c.bf16 %v78, %v78
    %v80 = vld [vmem:[%s4] sm:$0xff]
    %v81 = vld [vmem:[%s5] sm:$0xf]
    %v82 = vld [vmem:[#allocation5] sm:$0xff]
    %v83 = vld [vmem:[#allocation5 + $0x8] sm:$0xff]
    %v84 = vld [vmem:[#allocation5 + $0x10] sm:$0xff]
    %v85 = vld [vmem:[#allocation5 + $0x18] sm:$0xff]
    %v87 = vlaneseq
    %v88 = vshrl.u32 %v87, 7
    %v89 = vsub.s32 0, %v88
    %v90 = vrot.slane %v80, %v89
    %v91 = vlaneseq
    %v92 = vshrl.u32 %v91, 7
    %v93 = vsub.s32 2, %v92
    %v94 = vrot.slane %v80, %v93
    %v95 = vlaneseq
    %v96 = vshrl.u32 %v95, 7
    %v97 = vsub.s32 4, %v96
    %v98 = vrot.slane %v80, %v97
    %v99 = vlaneseq
    %v100 = vshrl.u32 %v99, 7
    %v101 = vsub.s32 6, %v100
    %v102 = vrot.slane %v80, %v101
    %v107 = vlaneseq
    %v108 = vshrl.u32 %v107, 7
    %v109 = vsub.s32 0, %v108
    %v110 = vrot.slane %v90, %v109
    %v111 = vlaneseq
    %v112 = vshrl.u32 %v111, 7
    %v113 = vsub.s32 0, %v112
    %v114 = vrot.slane %v94, %v113
    %v115 = vlaneseq
    %v116 = vshrl.u32 %v115, 7
    %v117 = vsub.s32 0, %v116
    %v118 = vrot.slane %v98, %v117
    %v119 = vlaneseq
    %v120 = vshrl.u32 %v119, 7
    %v121 = vsub.s32 0, %v120
    %v122 = vrot.slane %v102, %v121
    %v127 = vunpack.c.l.b16 %v82
    %v128 = vunpack.c.h.b16 %v82
    %v129 = vunpack.c.l.b16 %v83
    %v130 = vunpack.c.h.b16 %v83
    %v131 = vunpack.c.l.b16 %v84
    %v132 = vunpack.c.h.b16 %v84
    %v133 = vunpack.c.l.b16 %v85
    %v134 = vunpack.c.h.b16 %v85
    %v135 = vpack.c.b16 %v131, %v127
    %v136 = vpack.c.b16 %v132, %v128
    %v137 = vpack.c.b16 %v133, %v129
    %v138 = vpack.c.b16 %v134, %v130
    %vm143 = vcmask 130048
    %v145 = vsel %vm143, %v79, 0
    %147 = vmatprep.subr.bf16.mxu0 %v136
    %148 = vmatpush1.bf16.msra.mxu0 %v135
    %149 = vmatprep.subr.bf16.mxu0 0
    %150 = vmatpush1.bf16.msra.mxu0 0
    %151 = vmatprep.subr.bf16.mxu0 0
    %152 = vmatpush1.bf16.msra.mxu0 0
    %153 = vmatprep.subr.bf16.mxu0 0
    %154 = vmatpush1.bf16.msra.mxu0 0
    %155 = vmatprep.subr.bf16.mxu0 0
    %156 = vmatpush1.bf16.msra.mxu0 0
    %157 = vmatprep.subr.bf16.mxu0 0
    %158 = vmatpush1.bf16.msra.mxu0 0
    %159 = vmatprep.subr.bf16.mxu0 0
    %160 = vmatpush1.bf16.msra.mxu0 0
    %161 = vmatprep.subr.bf16.mxu0 0
    %162 = vmatpush1.bf16.msra.mxu0 0
    %163 = vmatprep.subr.bf16.mxu0 0
    %164 = vmatpush1.bf16.msra.mxu0 0
    %165 = vmatprep.subr.bf16.mxu0 0
    %166 = vmatpush1.bf16.msra.mxu0 0
    %167 = vmatprep.subr.bf16.mxu0 0
    %168 = vmatpush1.bf16.msra.mxu0 0
    %169 = vmatprep.subr.bf16.mxu0 0
    %170 = vmatpush1.bf16.msra.mxu0 0
    %171 = vmatprep.subr.bf16.mxu0 0
    %172 = vmatpush1.bf16.msra.mxu0 0
    %173 = vmatprep.subr.bf16.mxu0 0
    %174 = vmatpush1.bf16.msra.mxu0 0
    %175 = vmatprep.subr.bf16.mxu0 0
    %176 = vmatpush1.bf16.msra.mxu0 0
    %177 = vmatprep.subr.bf16.mxu0 0
    %178 = vmatpush1.bf16.msra.mxu0 0
    %179 = vmatprep.mubr.bf16.mxu0 0
    %180 = vmatmul.mubr.bf16.gmra.mrb[0].mxu0 %v145
    %v181 = vpop.f32.mrb[0].mxu0
    %v182 = vadd.f32 %v110, %v181
    %v183 = vpop.f32.mrb[0].mxu0
    %v184 = vadd.f32 %v114, %v183
    %v185 = vpop.f32.mrb[0].mxu0
    %v186 = vpop.f32.mrb[0].mxu0
    %187 = vdwg.mxu0
    %188 = vmatprep.subr.bf16.mxu0 %v138
    %189 = vmatpush1.bf16.msra.mxu0 %v137
    %190 = vmatprep.subr.bf16.mxu0 0
    %191 = vmatpush1.bf16.msra.mxu0 0
    %192 = vmatprep.subr.bf16.mxu0 0
    %193 = vmatpush1.bf16.msra.mxu0 0
    %194 = vmatprep.subr.bf16.mxu0 0
    %195 = vmatpush1.bf16.msra.mxu0 0
    %196 = vmatprep.subr.bf16.mxu0 0
    %197 = vmatpush1.bf16.msra.mxu0 0
    %198 = vmatprep.subr.bf16.mxu0 0
    %199 = vmatpush1.bf16.msra.mxu0 0
    %200 = vmatprep.subr.bf16.mxu0 0
    %201 = vmatpush1.bf16.msra.mxu0 0
    %202 = vmatprep.subr.bf16.mxu0 0
    %203 = vmatpush1.bf16.msra.mxu0 0
    %204 = vmatprep.subr.bf16.mxu0 0
    %205 = vmatpush1.bf16.msra.mxu0 0
    %206 = vmatprep.subr.bf16.mxu0 0
    %207 = vmatpush1.bf16.msra.mxu0 0
    %208 = vmatprep.subr.bf16.mxu0 0
    %209 = vmatpush1.bf16.msra.mxu0 0
    %210 = vmatprep.subr.bf16.mxu0 0
    %211 = vmatpush1.bf16.msra.mxu0 0
    %212 = vmatprep.subr.bf16.mxu0 0
    %213 = vmatpush1.bf16.msra.mxu0 0
    %214 = vmatprep.subr.bf16.mxu0 0
    %215 = vmatpush1.bf16.msra.mxu0 0
    %216 = vmatprep.subr.bf16.mxu0 0
    %217 = vmatpush1.bf16.msra.mxu0 0
    %218 = vmatprep.subr.bf16.mxu0 0
    %219 = vmatpush1.bf16.msra.mxu0 0
    %220 = vmatprep.mubr.bf16.mxu0 0
    %221 = vmatmul.mubr.bf16.gmra.mrb[0].mxu0 %v145
    %v222 = vpop.f32.mrb[0].mxu0
    %v223 = vadd.f32 %v118, %v222
    %v224 = vpop.f32.mrb[0].mxu0
    %v225 = vadd.f32 %v122, %v224
    %v226 = vpop.f32.mrb[0].mxu0
    %v227 = vpop.f32.mrb[0].mxu0
    %228 = vdwg.mxu0
    %v229 = vmax.f32 %v182, 0.0
    %v230 = vmax.f32 %v184, 0.0
    %v231 = vmax.f32 %v223, 0.0
    %v232 = vmax.f32 %v225, 0.0
    %v233 = vpack.c.bf16 %v229, %v229
    %v234 = vpack.c.bf16 %v230, %v230
    %v235 = vpack.c.bf16 %v231, %v231
    %v236 = vpack.c.bf16 %v232, %v232
    %v237 = vld [vmem:[#allocation7] sm:$0xff]
    %v238 = vld [vmem:[#allocation7 + $0x8] sm:$0xff]
    %v239 = vld [vmem:[#allocation7 + $0x10] sm:$0xff]
    %v240 = vld [vmem:[#allocation7 + $0x18] sm:$0xff]
    %v241 = vld [vmem:[#allocation7 + $0x20] sm:$0xff]
    %v242 = vld [vmem:[#allocation7 + $0x28] sm:$0xff]
    %v243 = vld [vmem:[#allocation7 + $0x30] sm:$0xff]
    %v244 = vld [vmem:[#allocation7 + $0x38] sm:$0xff]
    %v245 = vld [vmem:[#allocation7 + $0x40] sm:$0xff]
    %v246 = vld [vmem:[#allocation7 + $0x48] sm:$0xff]
    %v247 = vld [vmem:[#allocation7 + $0x50] sm:$0xff]
    %v248 = vld [vmem:[#allocation7 + $0x58] sm:$0xff]
    %v249 = vld [vmem:[#allocation7 + $0x60] sm:$0xff]
    %v250 = vld [vmem:[#allocation7 + $0x68] sm:$0xff]
    %v251 = vld [vmem:[#allocation7 + $0x70] sm:$0xff]
    %v252 = vld [vmem:[#allocation7 + $0x78] sm:$0xff]
    %v253 = vld [vmem:[#allocation7 + $0x80] sm:$0xff]
    %v254 = vld [vmem:[#allocation7 + $0x88] sm:$0xff]
    %v255 = vld [vmem:[#allocation7 + $0x90] sm:$0xff]
    %v256 = vld [vmem:[#allocation7 + $0x98] sm:$0xff]
    %v257 = vld [vmem:[#allocation7 + $0xa0] sm:$0xff]
    %v258 = vld [vmem:[#allocation7 + $0xa8] sm:$0xff]
    %v259 = vld [vmem:[#allocation7 + $0xb0] sm:$0xff]
    %v260 = vld [vmem:[#allocation7 + $0xb8] sm:$0xff]
    %v261 = vld [vmem:[#allocation7 + $0xc0] sm:$0xff]
    %v262 = vld [vmem:[#allocation7 + $0xc8] sm:$0xff]
    %v263 = vld [vmem:[#allocation7 + $0xd0] sm:$0xff]
    %v264 = vld [vmem:[#allocation7 + $0xd8] sm:$0xff]
    %v265 = vld [vmem:[#allocation7 + $0xe0] sm:$0xff]
    %v266 = vld [vmem:[#allocation7 + $0xe8] sm:$0xff]
    %v267 = vld [vmem:[#allocation7 + $0xf0] sm:$0xff]
    %v268 = vld [vmem:[#allocation7 + $0xf8] sm:$0xff]
    %v269 = vld [vmem:[#allocation7 + $0x100] sm:$0xff]
    %v270 = vld [vmem:[#allocation7 + $0x108] sm:$0xff]
    %v271 = vld [vmem:[#allocation7 + $0x110] sm:$0xff]
    %v272 = vld [vmem:[#allocation7 + $0x118] sm:$0xff]
    %v273 = vld [vmem:[#allocation7 + $0x120] sm:$0xff]
    %v274 = vld [vmem:[#allocation7 + $0x128] sm:$0xff]
    %v275 = vld [vmem:[#allocation7 + $0x130] sm:$0xff]
    %v276 = vld [vmem:[#allocation7 + $0x138] sm:$0xff]
    %v277 = vld [vmem:[#allocation7 + $0x140] sm:$0xff]
    %v278 = vld [vmem:[#allocation7 + $0x148] sm:$0xff]
    %v279 = vld [vmem:[#allocation7 + $0x150] sm:$0xff]
    %v280 = vld [vmem:[#allocation7 + $0x158] sm:$0xff]
    %v281 = vld [vmem:[#allocation7 + $0x160] sm:$0xff]
    %v282 = vld [vmem:[#allocation7 + $0x168] sm:$0xff]
    %v283 = vld [vmem:[#allocation7 + $0x170] sm:$0xff]
    %v284 = vld [vmem:[#allocation7 + $0x178] sm:$0xff]
    %v285 = vld [vmem:[#allocation7 + $0x180] sm:$0xff]
    %v286 = vld [vmem:[#allocation7 + $0x188] sm:$0xff]
    %v287 = vld [vmem:[#allocation7 + $0x190] sm:$0xff]
    %v288 = vld [vmem:[#allocation7 + $0x198] sm:$0xff]
    %v289 = vld [vmem:[#allocation7 + $0x1a0] sm:$0xff]
    %v290 = vld [vmem:[#allocation7 + $0x1a8] sm:$0xff]
    %v291 = vld [vmem:[#allocation7 + $0x1b0] sm:$0xff]
    %v292 = vld [vmem:[#allocation7 + $0x1b8] sm:$0xff]
    %v293 = vld [vmem:[#allocation7 + $0x1c0] sm:$0xff]
    %v294 = vld [vmem:[#allocation7 + $0x1c8] sm:$0xff]
    %v295 = vld [vmem:[#allocation7 + $0x1d0] sm:$0xff]
    %v296 = vld [vmem:[#allocation7 + $0x1d8] sm:$0xff]
    %v297 = vld [vmem:[#allocation7 + $0x1e0] sm:$0xff]
    %v298 = vld [vmem:[#allocation7 + $0x1e8] sm:$0xff]
    %v299 = vld [vmem:[#allocation7 + $0x1f0] sm:$0xff]
    %v300 = vld [vmem:[#allocation7 + $0x1f8] sm:$0xff]
    %v301 = vld [vmem:[#allocation7 + $0x200] sm:$0xff]
    %v302 = vld [vmem:[#allocation7 + $0x208] sm:$0xff]
    %v303 = vld [vmem:[#allocation7 + $0x210] sm:$0xff]
    %v304 = vld [vmem:[#allocation7 + $0x218] sm:$0xff]
    %v305 = vld [vmem:[#allocation7 + $0x220] sm:$0xff]
    %v306 = vld [vmem:[#allocation7 + $0x228] sm:$0xff]
    %v307 = vld [vmem:[#allocation7 + $0x230] sm:$0xff]
    %v308 = vld [vmem:[#allocation7 + $0x238] sm:$0xff]
    %v309 = vld [vmem:[#allocation7 + $0x240] sm:$0xff]
    %v310 = vld [vmem:[#allocation7 + $0x248] sm:$0xff]
    %v311 = vld [vmem:[#allocation7 + $0x250] sm:$0xff]
    %v312 = vld [vmem:[#allocation7 + $0x258] sm:$0xff]
    %v313 = vld [vmem:[#allocation7 + $0x260] sm:$0xff]
    %v314 = vld [vmem:[#allocation7 + $0x268] sm:$0xff]
    %v315 = vld [vmem:[#allocation7 + $0x270] sm:$0xff]
    %v316 = vld [vmem:[#allocation7 + $0x278] sm:$0xff]
    %v317 = vld [vmem:[#allocation7 + $0x280] sm:$0xff]
    %v318 = vld [vmem:[#allocation7 + $0x288] sm:$0xff]
    %v319 = vld [vmem:[#allocation7 + $0x290] sm:$0xff]
    %v320 = vld [vmem:[#allocation7 + $0x298] sm:$0xff]
    %v321 = vld [vmem:[#allocation7 + $0x2a0] sm:$0xff]
    %v322 = vld [vmem:[#allocation7 + $0x2a8] sm:$0xff]
    %v323 = vld [vmem:[#allocation7 + $0x2b0] sm:$0xff]
    %v324 = vld [vmem:[#allocation7 + $0x2b8] sm:$0xff]
    %v325 = vld [vmem:[#allocation7 + $0x2c0] sm:$0xff]
    %v326 = vld [vmem:[#allocation7 + $0x2c8] sm:$0xff]
    %v327 = vld [vmem:[#allocation7 + $0x2d0] sm:$0xff]
    %v328 = vld [vmem:[#allocation7 + $0x2d8] sm:$0xff]
    %v329 = vld [vmem:[#allocation7 + $0x2e0] sm:$0xff]
    %v330 = vld [vmem:[#allocation7 + $0x2e8] sm:$0xff]
    %v331 = vld [vmem:[#allocation7 + $0x2f0] sm:$0xff]
    %v332 = vld [vmem:[#allocation7 + $0x2f8] sm:$0xff]
    %v333 = vld [vmem:[#allocation7 + $0x300] sm:$0xff]
    %v334 = vld [vmem:[#allocation7 + $0x308] sm:$0xff]
    %v335 = vld [vmem:[#allocation7 + $0x310] sm:$0xff]
    %v336 = vld [vmem:[#allocation7 + $0x318] sm:$0xff]
    %v337 = vld [vmem:[#allocation7 + $0x320] sm:$0xff]
    %v338 = vld [vmem:[#allocation7 + $0x328] sm:$0xff]
    %v339 = vld [vmem:[#allocation7 + $0x330] sm:$0xff]
    %v340 = vld [vmem:[#allocation7 + $0x338] sm:$0xff]
    %v341 = vld [vmem:[#allocation7 + $0x340] sm:$0xff]
    %v342 = vld [vmem:[#allocation7 + $0x348] sm:$0xff]
    %v343 = vld [vmem:[#allocation7 + $0x350] sm:$0xff]
    %v344 = vld [vmem:[#allocation7 + $0x358] sm:$0xff]
    %v345 = vld [vmem:[#allocation7 + $0x360] sm:$0xff]
    %v346 = vld [vmem:[#allocation7 + $0x368] sm:$0xff]
    %v347 = vld [vmem:[#allocation7 + $0x370] sm:$0xff]
    %v348 = vld [vmem:[#allocation7 + $0x378] sm:$0xff]
    %v349 = vld [vmem:[#allocation7 + $0x380] sm:$0xff]
    %v350 = vld [vmem:[#allocation7 + $0x388] sm:$0xff]
    %v351 = vld [vmem:[#allocation7 + $0x390] sm:$0xff]
    %v352 = vld [vmem:[#allocation7 + $0x398] sm:$0xff]
    %v353 = vld [vmem:[#allocation7 + $0x3a0] sm:$0xff]
    %v354 = vld [vmem:[#allocation7 + $0x3a8] sm:$0xff]
    %v355 = vld [vmem:[#allocation7 + $0x3b0] sm:$0xff]
    %v356 = vld [vmem:[#allocation7 + $0x3b8] sm:$0xff]
    %v357 = vld [vmem:[#allocation7 + $0x3c0] sm:$0xff]
    %v358 = vld [vmem:[#allocation7 + $0x3c8] sm:$0xff]
    %v359 = vld [vmem:[#allocation7 + $0x3d0] sm:$0xff]
    %v360 = vld [vmem:[#allocation7 + $0x3d8] sm:$0xff]
    %v361 = vld [vmem:[#allocation7 + $0x3e0] sm:$0xff]
    %v362 = vld [vmem:[#allocation7 + $0x3e8] sm:$0xff]
    %v363 = vld [vmem:[#allocation7 + $0x3f0] sm:$0xff]
    %v364 = vld [vmem:[#allocation7 + $0x3f8] sm:$0xff]
    %v365 = vlaneseq
    %v366 = vshrl.u32 %v365, 7
    %v367 = vsub.s32 1, %v366
    %v368 = vrot.slane %v80, %v367
    %v369 = vlaneseq
    %v370 = vshrl.u32 %v369, 7
    %v371 = vsub.s32 3, %v370
    %v372 = vrot.slane %v80, %v371
    %v373 = vlaneseq
    %v374 = vshrl.u32 %v373, 7
    %v375 = vsub.s32 5, %v374
    %v376 = vrot.slane %v80, %v375
    %v377 = vlaneseq
    %v378 = vshrl.u32 %v377, 7
    %v379 = vsub.s32 7, %v378
    %v380 = vrot.slane %v80, %v379
    %v385 = vlaneseq
    %v386 = vshrl.u32 %v385, 7
    %v387 = vsub.s32 1, %v386
    %v388 = vrot.slane %v368, %v387
    %v389 = vlaneseq
    %v390 = vshrl.u32 %v389, 7
    %v391 = vsub.s32 1, %v390
    %v392 = vrot.slane %v372, %v391
    %v393 = vlaneseq
    %v394 = vshrl.u32 %v393, 7
    %v395 = vsub.s32 1, %v394
    %v396 = vrot.slane %v376, %v395
    %v397 = vlaneseq
    %v398 = vshrl.u32 %v397, 7
    %v399 = vsub.s32 1, %v398
    %v400 = vrot.slane %v380, %v399
    %v529 = vunpack.c.l.b16 %v237
    %v530 = vunpack.c.h.b16 %v237
    %v531 = vunpack.c.l.b16 %v238
    %v532 = vunpack.c.h.b16 %v238
    %v533 = vunpack.c.l.b16 %v239
    %v534 = vunpack.c.h.b16 %v239
    %v535 = vunpack.c.l.b16 %v240
    %v536 = vunpack.c.h.b16 %v240
    %v537 = vunpack.c.l.b16 %v241
    %v538 = vunpack.c.h.b16 %v241
    %v539 = vunpack.c.l.b16 %v242
    %v540 = vunpack.c.h.b16 %v242
    %v541 = vunpack.c.l.b16 %v243
    %v542 = vunpack.c.h.b16 %v243
    %v543 = vunpack.c.l.b16 %v244
    %v544 = vunpack.c.h.b16 %v244
    %v545 = vunpack.c.l.b16 %v245
    %v546 = vunpack.c.h.b16 %v245
    %v547 = vunpack.c.l.b16 %v246
    %v548 = vunpack.c.h.b16 %v246
    %v549 = vunpack.c.l.b16 %v247
    %v550 = vunpack.c.h.b16 %v247
    %v551 = vunpack.c.l.b16 %v248
    %v552 = vunpack.c.h.b16 %v248
    %v553 = vunpack.c.l.b16 %v249
    %v554 = vunpack.c.h.b16 %v249
    %v555 = vunpack.c.l.b16 %v250
    %v556 = vunpack.c.h.b16 %v250
    %v557 = vunpack.c.l.b16 %v251
    %v558 = vunpack.c.h.b16 %v251
    %v559 = vunpack.c.l.b16 %v252
    %v560 = vunpack.c.h.b16 %v252
    %v561 = vunpack.c.l.b16 %v253
    %v562 = vunpack.c.h.b16 %v253
    %v563 = vunpack.c.l.b16 %v254
    %v564 = vunpack.c.h.b16 %v254
    %v565 = vunpack.c.l.b16 %v255
    %v566 = vunpack.c.h.b16 %v255
    %v567 = vunpack.c.l.b16 %v256
    %v568 = vunpack.c.h.b16 %v256
    %v569 = vunpack.c.l.b16 %v257
    %v570 = vunpack.c.h.b16 %v257
    %v571 = vunpack.c.l.b16 %v258
    %v572 = vunpack.c.h.b16 %v258
    %v573 = vunpack.c.l.b16 %v259
    %v574 = vunpack.c.h.b16 %v259
    %v575 = vunpack.c.l.b16 %v260
    %v576 = vunpack.c.h.b16 %v260
    %v577 = vunpack.c.l.b16 %v261
    %v578 = vunpack.c.h.b16 %v261
    %v579 = vunpack.c.l.b16 %v262
    %v580 = vunpack.c.h.b16 %v262
    %v581 = vunpack.c.l.b16 %v263
    %v582 = vunpack.c.h.b16 %v263
    %v583 = vunpack.c.l.b16 %v264
    %v584 = vunpack.c.h.b16 %v264
    %v585 = vunpack.c.l.b16 %v265
    %v586 = vunpack.c.h.b16 %v265
    %v587 = vunpack.c.l.b16 %v266
    %v588 = vunpack.c.h.b16 %v266
    %v589 = vunpack.c.l.b16 %v267
    %v590 = vunpack.c.h.b16 %v267
    %v591 = vunpack.c.l.b16 %v268
    %v592 = vunpack.c.h.b16 %v268
    %v593 = vunpack.c.l.b16 %v269
    %v594 = vunpack.c.h.b16 %v269
    %v595 = vunpack.c.l.b16 %v270
    %v596 = vunpack.c.h.b16 %v270
    %v597 = vunpack.c.l.b16 %v271
    %v598 = vunpack.c.h.b16 %v271
    %v599 = vunpack.c.l.b16 %v272
    %v600 = vunpack.c.h.b16 %v272
    %v601 = vunpack.c.l.b16 %v273
    %v602 = vunpack.c.h.b16 %v273
    %v603 = vunpack.c.l.b16 %v274
    %v604 = vunpack.c.h.b16 %v274
    %v605 = vunpack.c.l.b16 %v275
    %v606 = vunpack.c.h.b16 %v275
    %v607 = vunpack.c.l.b16 %v276
    %v608 = vunpack.c.h.b16 %v276
    %v609 = vunpack.c.l.b16 %v277
    %v610 = vunpack.c.h.b16 %v277
    %v611 = vunpack.c.l.b16 %v278
    %v612 = vunpack.c.h.b16 %v278
    %v613 = vunpack.c.l.b16 %v279
    %v614 = vunpack.c.h.b16 %v279
    %v615 = vunpack.c.l.b16 %v280
    %v616 = vunpack.c.h.b16 %v280
    %v617 = vunpack.c.l.b16 %v281
    %v618 = vunpack.c.h.b16 %v281
    %v619 = vunpack.c.l.b16 %v282
    %v620 = vunpack.c.h.b16 %v282
    %v621 = vunpack.c.l.b16 %v283
    %v622 = vunpack.c.h.b16 %v283
    %v623 = vunpack.c.l.b16 %v284
    %v624 = vunpack.c.h.b16 %v284
    %v625 = vunpack.c.l.b16 %v285
    %v626 = vunpack.c.h.b16 %v285
    %v627 = vunpack.c.l.b16 %v286
    %v628 = vunpack.c.h.b16 %v286
    %v629 = vunpack.c.l.b16 %v287
    %v630 = vunpack.c.h.b16 %v287
    %v631 = vunpack.c.l.b16 %v288
    %v632 = vunpack.c.h.b16 %v288
    %v633 = vunpack.c.l.b16 %v289
    %v634 = vunpack.c.h.b16 %v289
    %v635 = vunpack.c.l.b16 %v290
    %v636 = vunpack.c.h.b16 %v290
    %v637 = vunpack.c.l.b16 %v291
    %v638 = vunpack.c.h.b16 %v291
    %v639 = vunpack.c.l.b16 %v292
    %v640 = vunpack.c.h.b16 %v292
    %v641 = vunpack.c.l.b16 %v293
    %v642 = vunpack.c.h.b16 %v293
    %v643 = vunpack.c.l.b16 %v294
    %v644 = vunpack.c.h.b16 %v294
    %v645 = vunpack.c.l.b16 %v295
    %v646 = vunpack.c.h.b16 %v295
    %v647 = vunpack.c.l.b16 %v296
    %v648 = vunpack.c.h.b16 %v296
    %v649 = vunpack.c.l.b16 %v297
    %v650 = vunpack.c.h.b16 %v297
    %v651 = vunpack.c.l.b16 %v298
    %v652 = vunpack.c.h.b16 %v298
    %v653 = vunpack.c.l.b16 %v299
    %v654 = vunpack.c.h.b16 %v299
    %v655 = vunpack.c.l.b16 %v300
    %v656 = vunpack.c.h.b16 %v300
    %v657 = vunpack.c.l.b16 %v301
    %v658 = vunpack.c.h.b16 %v301
    %v659 = vunpack.c.l.b16 %v302
    %v660 = vunpack.c.h.b16 %v302
    %v661 = vunpack.c.l.b16 %v303
    %v662 = vunpack.c.h.b16 %v303
    %v663 = vunpack.c.l.b16 %v304
    %v664 = vunpack.c.h.b16 %v304
    %v665 = vunpack.c.l.b16 %v305
    %v666 = vunpack.c.h.b16 %v305
    %v667 = vunpack.c.l.b16 %v306
    %v668 = vunpack.c.h.b16 %v306
    %v669 = vunpack.c.l.b16 %v307
    %v670 = vunpack.c.h.b16 %v307
    %v671 = vunpack.c.l.b16 %v308
    %v672 = vunpack.c.h.b16 %v308
    %v673 = vunpack.c.l.b16 %v309
    %v674 = vunpack.c.h.b16 %v309
    %v675 = vunpack.c.l.b16 %v310
    %v676 = vunpack.c.h.b16 %v310
    %v677 = vunpack.c.l.b16 %v311
    %v678 = vunpack.c.h.b16 %v311
    %v679 = vunpack.c.l.b16 %v312
    %v680 = vunpack.c.h.b16 %v312
    %v681 = vunpack.c.l.b16 %v313
    %v682 = vunpack.c.h.b16 %v313
    %v683 = vunpack.c.l.b16 %v314
    %v684 = vunpack.c.h.b16 %v314
    %v685 = vunpack.c.l.b16 %v315
    %v686 = vunpack.c.h.b16 %v315
    %v687 = vunpack.c.l.b16 %v316
    %v688 = vunpack.c.h.b16 %v316
    %v689 = vunpack.c.l.b16 %v317
    %v690 = vunpack.c.h.b16 %v317
    %v691 = vunpack.c.l.b16 %v318
    %v692 = vunpack.c.h.b16 %v318
    %v693 = vunpack.c.l.b16 %v319
    %v694 = vunpack.c.h.b16 %v319
    %v695 = vunpack.c.l.b16 %v320
    %v696 = vunpack.c.h.b16 %v320
    %v697 = vunpack.c.l.b16 %v321
    %v698 = vunpack.c.h.b16 %v321
    %v699 = vunpack.c.l.b16 %v322
    %v700 = vunpack.c.h.b16 %v322
    %v701 = vunpack.c.l.b16 %v323
    %v702 = vunpack.c.h.b16 %v323
    %v703 = vunpack.c.l.b16 %v324
    %v704 = vunpack.c.h.b16 %v324
    %v705 = vunpack.c.l.b16 %v325
    %v706 = vunpack.c.h.b16 %v325
    %v707 = vunpack.c.l.b16 %v326
    %v708 = vunpack.c.h.b16 %v326
    %v709 = vunpack.c.l.b16 %v327
    %v710 = vunpack.c.h.b16 %v327
    %v711 = vunpack.c.l.b16 %v328
    %v712 = vunpack.c.h.b16 %v328
    %v713 = vunpack.c.l.b16 %v329
    %v714 = vunpack.c.h.b16 %v329
    %v715 = vunpack.c.l.b16 %v330
    %v716 = vunpack.c.h.b16 %v330
    %v717 = vunpack.c.l.b16 %v331
    %v718 = vunpack.c.h.b16 %v331
    %v719 = vunpack.c.l.b16 %v332
    %v720 = vunpack.c.h.b16 %v332
    %v721 = vunpack.c.l.b16 %v333
    %v722 = vunpack.c.h.b16 %v333
    %v723 = vunpack.c.l.b16 %v334
    %v724 = vunpack.c.h.b16 %v334
    %v725 = vunpack.c.l.b16 %v335
    %v726 = vunpack.c.h.b16 %v335
    %v727 = vunpack.c.l.b16 %v336
    %v728 = vunpack.c.h.b16 %v336
    %v729 = vunpack.c.l.b16 %v337
    %v730 = vunpack.c.h.b16 %v337
    %v731 = vunpack.c.l.b16 %v338
    %v732 = vunpack.c.h.b16 %v338
    %v733 = vunpack.c.l.b16 %v339
    %v734 = vunpack.c.h.b16 %v339
    %v735 = vunpack.c.l.b16 %v340
    %v736 = vunpack.c.h.b16 %v340
    %v737 = vunpack.c.l.b16 %v341
    %v738 = vunpack.c.h.b16 %v341
    %v739 = vunpack.c.l.b16 %v342
    %v740 = vunpack.c.h.b16 %v342
    %v741 = vunpack.c.l.b16 %v343
    %v742 = vunpack.c.h.b16 %v343
    %v743 = vunpack.c.l.b16 %v344
    %v744 = vunpack.c.h.b16 %v344
    %v745 = vunpack.c.l.b16 %v345
    %v746 = vunpack.c.h.b16 %v345
    %v747 = vunpack.c.l.b16 %v346
    %v748 = vunpack.c.h.b16 %v346
    %v749 = vunpack.c.l.b16 %v347
    %v750 = vunpack.c.h.b16 %v347
    %v751 = vunpack.c.l.b16 %v348
    %v752 = vunpack.c.h.b16 %v348
    %v753 = vunpack.c.l.b16 %v349
    %v754 = vunpack.c.h.b16 %v349
    %v755 = vunpack.c.l.b16 %v350
    %v756 = vunpack.c.h.b16 %v350
    %v757 = vunpack.c.l.b16 %v351
    %v758 = vunpack.c.h.b16 %v351
    %v759 = vunpack.c.l.b16 %v352
    %v760 = vunpack.c.h.b16 %v352
    %v761 = vunpack.c.l.b16 %v353
    %v762 = vunpack.c.h.b16 %v353
    %v763 = vunpack.c.l.b16 %v354
    %v764 = vunpack.c.h.b16 %v354
    %v765 = vunpack.c.l.b16 %v355
    %v766 = vunpack.c.h.b16 %v355
    %v767 = vunpack.c.l.b16 %v356
    %v768 = vunpack.c.h.b16 %v356
    %v769 = vunpack.c.l.b16 %v357
    %v770 = vunpack.c.h.b16 %v357
    %v771 = vunpack.c.l.b16 %v358
    %v772 = vunpack.c.h.b16 %v358
    %v773 = vunpack.c.l.b16 %v359
    %v774 = vunpack.c.h.b16 %v359
    %v775 = vunpack.c.l.b16 %v360
    %v776 = vunpack.c.h.b16 %v360
    %v777 = vunpack.c.l.b16 %v361
    %v778 = vunpack.c.h.b16 %v361
    %v779 = vunpack.c.l.b16 %v362
    %v780 = vunpack.c.h.b16 %v362
    %v781 = vunpack.c.l.b16 %v363
    %v782 = vunpack.c.h.b16 %v363
    %v783 = vunpack.c.l.b16 %v364
    %v784 = vunpack.c.h.b16 %v364
    %v785 = vpack.c.b16 %v533, %v529
    %v786 = vpack.c.b16 %v534, %v530
    %v787 = vpack.c.b16 %v535, %v531
    %v788 = vpack.c.b16 %v536, %v532
    %v789 = vpack.c.b16 %v541, %v537
    %v790 = vpack.c.b16 %v542, %v538
    %v791 = vpack.c.b16 %v543, %v539
    %v792 = vpack.c.b16 %v544, %v540
    %v793 = vpack.c.b16 %v549, %v545
    %v794 = vpack.c.b16 %v550, %v546
    %v795 = vpack.c.b16 %v551, %v547
    %v796 = vpack.c.b16 %v552, %v548
    %v797 = vpack.c.b16 %v557, %v553
    %v798 = vpack.c.b16 %v558, %v554
    %v799 = vpack.c.b16 %v559, %v555
    %v800 = vpack.c.b16 %v560, %v556
    %v801 = vpack.c.b16 %v565, %v561
    %v802 = vpack.c.b16 %v566, %v562
    %v803 = vpack.c.b16 %v567, %v563
    %v804 = vpack.c.b16 %v568, %v564
    %v805 = vpack.c.b16 %v573, %v569
    %v806 = vpack.c.b16 %v574, %v570
    %v807 = vpack.c.b16 %v575, %v571
    %v808 = vpack.c.b16 %v576, %v572
    %v809 = vpack.c.b16 %v581, %v577
    %v810 = vpack.c.b16 %v582, %v578
    %v811 = vpack.c.b16 %v583, %v579
    %v812 = vpack.c.b16 %v584, %v580
    %v813 = vpack.c.b16 %v589, %v585
    %v814 = vpack.c.b16 %v590, %v586
    %v815 = vpack.c.b16 %v591, %v587
    %v816 = vpack.c.b16 %v592, %v588
    %v817 = vpack.c.b16 %v597, %v593
    %v818 = vpack.c.b16 %v598, %v594
    %v819 = vpack.c.b16 %v599, %v595
    %v820 = vpack.c.b16 %v600, %v596
    %v821 = vpack.c.b16 %v605, %v601
    %v822 = vpack.c.b16 %v606, %v602
    %v823 = vpack.c.b16 %v607, %v603
    %v824 = vpack.c.b16 %v608, %v604
    %v825 = vpack.c.b16 %v613, %v609
    %v826 = vpack.c.b16 %v614, %v610
    %v827 = vpack.c.b16 %v615, %v611
    %v828 = vpack.c.b16 %v616, %v612
    %v829 = vpack.c.b16 %v621, %v617
    %v830 = vpack.c.b16 %v622, %v618
    %v831 = vpack.c.b16 %v623, %v619
    %v832 = vpack.c.b16 %v624, %v620
    %v833 = vpack.c.b16 %v629, %v625
    %v834 = vpack.c.b16 %v630, %v626
    %v835 = vpack.c.b16 %v631, %v627
    %v836 = vpack.c.b16 %v632, %v628
    %v837 = vpack.c.b16 %v637, %v633
    %v838 = vpack.c.b16 %v638, %v634
    %v839 = vpack.c.b16 %v639, %v635
    %v840 = vpack.c.b16 %v640, %v636
    %v841 = vpack.c.b16 %v645, %v641
    %v842 = vpack.c.b16 %v646, %v642
    %v843 = vpack.c.b16 %v647, %v643
    %v844 = vpack.c.b16 %v648, %v644
    %v845 = vpack.c.b16 %v653, %v649
    %v846 = vpack.c.b16 %v654, %v650
    %v847 = vpack.c.b16 %v655, %v651
    %v848 = vpack.c.b16 %v656, %v652
    %v849 = vpack.c.b16 %v661, %v657
    %v850 = vpack.c.b16 %v662, %v658
    %v851 = vpack.c.b16 %v663, %v659
    %v852 = vpack.c.b16 %v664, %v660
    %v853 = vpack.c.b16 %v669, %v665
    %v854 = vpack.c.b16 %v670, %v666
    %v855 = vpack.c.b16 %v671, %v667
    %v856 = vpack.c.b16 %v672, %v668
    %v857 = vpack.c.b16 %v677, %v673
    %v858 = vpack.c.b16 %v678, %v674
    %v859 = vpack.c.b16 %v679, %v675
    %v860 = vpack.c.b16 %v680, %v676
    %v861 = vpack.c.b16 %v685, %v681
    %v862 = vpack.c.b16 %v686, %v682
    %v863 = vpack.c.b16 %v687, %v683
    %v864 = vpack.c.b16 %v688, %v684
    %v865 = vpack.c.b16 %v693, %v689
    %v866 = vpack.c.b16 %v694, %v690
    %v867 = vpack.c.b16 %v695, %v691
    %v868 = vpack.c.b16 %v696, %v692
    %v869 = vpack.c.b16 %v701, %v697
    %v870 = vpack.c.b16 %v702, %v698
    %v871 = vpack.c.b16 %v703, %v699
    %v872 = vpack.c.b16 %v704, %v700
    %v873 = vpack.c.b16 %v709, %v705
    %v874 = vpack.c.b16 %v710, %v706
    %v875 = vpack.c.b16 %v711, %v707
    %v876 = vpack.c.b16 %v712, %v708
    %v877 = vpack.c.b16 %v717, %v713
    %v878 = vpack.c.b16 %v718, %v714
    %v879 = vpack.c.b16 %v719, %v715
    %v880 = vpack.c.b16 %v720, %v716
    %v881 = vpack.c.b16 %v725, %v721
    %v882 = vpack.c.b16 %v726, %v722
    %v883 = vpack.c.b16 %v727, %v723
    %v884 = vpack.c.b16 %v728, %v724
    %v885 = vpack.c.b16 %v733, %v729
    %v886 = vpack.c.b16 %v734, %v730
    %v887 = vpack.c.b16 %v735, %v731
    %v888 = vpack.c.b16 %v736, %v732
    %v889 = vpack.c.b16 %v741, %v737
    %v890 = vpack.c.b16 %v742, %v738
    %v891 = vpack.c.b16 %v743, %v739
    %v892 = vpack.c.b16 %v744, %v740
    %v893 = vpack.c.b16 %v749, %v745
    %v894 = vpack.c.b16 %v750, %v746
    %v895 = vpack.c.b16 %v751, %v747
    %v896 = vpack.c.b16 %v752, %v748
    %v897 = vpack.c.b16 %v757, %v753
    %v898 = vpack.c.b16 %v758, %v754
    %v899 = vpack.c.b16 %v759, %v755
    %v900 = vpack.c.b16 %v760, %v756
    %v901 = vpack.c.b16 %v765, %v761
    %v902 = vpack.c.b16 %v766, %v762
    %v903 = vpack.c.b16 %v767, %v763
    %v904 = vpack.c.b16 %v768, %v764
    %v905 = vpack.c.b16 %v773, %v769
    %v906 = vpack.c.b16 %v774, %v770
    %v907 = vpack.c.b16 %v775, %v771
    %v908 = vpack.c.b16 %v776, %v772
    %v909 = vpack.c.b16 %v781, %v777
    %v910 = vpack.c.b16 %v782, %v778
    %v911 = vpack.c.b16 %v783, %v779
    %v912 = vpack.c.b16 %v784, %v780
    %1041 = vmatprep.subr.bf16.mxu0 %v786
    %1042 = vmatpush1.bf16.msra.mxu0 %v785
    %1043 = vmatprep.subr.bf16.mxu0 %v790
    %1044 = vmatpush1.bf16.msra.mxu0 %v789
    %1045 = vmatprep.subr.bf16.mxu0 %v794
    %1046 = vmatpush1.bf16.msra.mxu0 %v793
    %1047 = vmatprep.subr.bf16.mxu0 %v798
    %1048 = vmatpush1.bf16.msra.mxu0 %v797
    %1049 = vmatprep.subr.bf16.mxu0 %v802
    %1050 = vmatpush1.bf16.msra.mxu0 %v801
    %1051 = vmatprep.subr.bf16.mxu0 %v806
    %1052 = vmatpush1.bf16.msra.mxu0 %v805
    %1053 = vmatprep.subr.bf16.mxu0 %v810
    %1054 = vmatpush1.bf16.msra.mxu0 %v809
    %1055 = vmatprep.subr.bf16.mxu0 %v814
    %1056 = vmatpush1.bf16.msra.mxu0 %v813
    %1057 = vmatprep.subr.bf16.mxu0 %v818
    %1058 = vmatpush1.bf16.msra.mxu0 %v817
    %1059 = vmatprep.subr.bf16.mxu0 %v822
    %1060 = vmatpush1.bf16.msra.mxu0 %v821
    %1061 = vmatprep.subr.bf16.mxu0 %v826
    %1062 = vmatpush1.bf16.msra.mxu0 %v825
    %1063 = vmatprep.subr.bf16.mxu0 %v830
    %1064 = vmatpush1.bf16.msra.mxu0 %v829
    %1065 = vmatprep.subr.bf16.mxu0 %v834
    %1066 = vmatpush1.bf16.msra.mxu0 %v833
    %1067 = vmatprep.subr.bf16.mxu0 %v838
    %1068 = vmatpush1.bf16.msra.mxu0 %v837
    %1069 = vmatprep.subr.bf16.mxu0 %v842
    %1070 = vmatpush1.bf16.msra.mxu0 %v841
    %1071 = vmatprep.subr.bf16.mxu0 %v846
    %1072 = vmatpush1.bf16.msra.mxu0 %v845
    %1073 = vmatprep.mubr.bf16.mxu0 %v234
    %1074 = vmatmul.mubr.bf16.gmra.mrb[0].mxu0 %v233
    %v1075 = vpop.f32.mrb[0].mxu0
    %v1076 = vadd.f32 %v388, %v1075
    %v1077 = vpop.f32.mrb[0].mxu0
    %v1078 = vadd.f32 %v392, %v1077
    %v1079 = vpop.f32.mrb[0].mxu0
    %v1080 = vpop.f32.mrb[0].mxu0
    %1081 = vdwg.mxu0
    %1082 = vmatprep.subr.bf16.mxu0 %v850
    %1083 = vmatpush1.bf16.msra.mxu0 %v849
    %1084 = vmatprep.subr.bf16.mxu0 %v854
    %1085 = vmatpush1.bf16.msra.mxu0 %v853
    %1086 = vmatprep.subr.bf16.mxu0 %v858
    %1087 = vmatpush1.bf16.msra.mxu0 %v857
    %1088 = vmatprep.subr.bf16.mxu0 %v862
    %1089 = vmatpush1.bf16.msra.mxu0 %v861
    %1090 = vmatprep.subr.bf16.mxu0 %v866
    %1091 = vmatpush1.bf16.msra.mxu0 %v865
    %1092 = vmatprep.subr.bf16.mxu0 %v870
    %1093 = vmatpush1.bf16.msra.mxu0 %v869
    %1094 = vmatprep.subr.bf16.mxu0 %v874
    %1095 = vmatpush1.bf16.msra.mxu0 %v873
    %1096 = vmatprep.subr.bf16.mxu0 %v878
    %1097 = vmatpush1.bf16.msra.mxu0 %v877
    %1098 = vmatprep.subr.bf16.mxu0 %v882
    %1099 = vmatpush1.bf16.msra.mxu0 %v881
    %1100 = vmatprep.subr.bf16.mxu0 %v886
    %1101 = vmatpush1.bf16.msra.mxu0 %v885
    %1102 = vmatprep.subr.bf16.mxu0 %v890
    %1103 = vmatpush1.bf16.msra.mxu0 %v889
    %1104 = vmatprep.subr.bf16.mxu0 %v894
    %1105 = vmatpush1.bf16.msra.mxu0 %v893
    %1106 = vmatprep.subr.bf16.mxu0 %v898
    %1107 = vmatpush1.bf16.msra.mxu0 %v897
    %1108 = vmatprep.subr.bf16.mxu0 %v902
    %1109 = vmatpush1.bf16.msra.mxu0 %v901
    %1110 = vmatprep.subr.bf16.mxu0 %v906
    %1111 = vmatpush1.bf16.msra.mxu0 %v905
    %1112 = vmatprep.subr.bf16.mxu0 %v910
    %1113 = vmatpush1.bf16.msra.mxu0 %v909
    %1114 = vmatprep.mubr.bf16.mxu0 %v236
    %1115 = vmatmul.mubr.bf16.gmra.mrb[0].mxu0 %v235
    %v1116 = vpop.f32.mrb[0].mxu0
    %v1117 = vadd.f32 %v1076, %v1116
    %v1118 = vpop.f32.mrb[0].mxu0
    %v1119 = vadd.f32 %v1078, %v1118
    %v1120 = vpop.f32.mrb[0].mxu0
    %v1121 = vpop.f32.mrb[0].mxu0
    %1122 = vdwg.mxu0
    %1123 = vmatprep.subr.bf16.mxu0 %v788
    %1124 = vmatpush1.bf16.msra.mxu0 %v787
    %1125 = vmatprep.subr.bf16.mxu0 %v792
    %1126 = vmatpush1.bf16.msra.mxu0 %v791
    %1127 = vmatprep.subr.bf16.mxu0 %v796
    %1128 = vmatpush1.bf16.msra.mxu0 %v795
    %1129 = vmatprep.subr.bf16.mxu0 %v800
    %1130 = vmatpush1.bf16.msra.mxu0 %v799
    %1131 = vmatprep.subr.bf16.mxu0 %v804
    %1132 = vmatpush1.bf16.msra.mxu0 %v803
    %1133 = vmatprep.subr.bf16.mxu0 %v808
    %1134 = vmatpush1.bf16.msra.mxu0 %v807
    %1135 = vmatprep.subr.bf16.mxu0 %v812
    %1136 = vmatpush1.bf16.msra.mxu0 %v811
    %1137 = vmatprep.subr.bf16.mxu0 %v816
    %1138 = vmatpush1.bf16.msra.mxu0 %v815
    %1139 = vmatprep.subr.bf16.mxu0 %v820
    %1140 = vmatpush1.bf16.msra.mxu0 %v819
    %1141 = vmatprep.subr.bf16.mxu0 %v824
    %1142 = vmatpush1.bf16.msra.mxu0 %v823
    %1143 = vmatprep.subr.bf16.mxu0 %v828
    %1144 = vmatpush1.bf16.msra.mxu0 %v827
    %1145 = vmatprep.subr.bf16.mxu0 %v832
    %1146 = vmatpush1.bf16.msra.mxu0 %v831
    %1147 = vmatprep.subr.bf16.mxu0 %v836
    %1148 = vmatpush1.bf16.msra.mxu0 %v835
    %1149 = vmatprep.subr.bf16.mxu0 %v840
    %1150 = vmatpush1.bf16.msra.mxu0 %v839
    %1151 = vmatprep.subr.bf16.mxu0 %v844
    %1152 = vmatpush1.bf16.msra.mxu0 %v843
    %1153 = vmatprep.subr.bf16.mxu0 %v848
    %1154 = vmatpush1.bf16.msra.mxu0 %v847
    %1155 = vmatprep.mubr.bf16.mxu0 %v234
    %1156 = vmatmul.mubr.bf16.gmra.mrb[0].mxu0 %v233
    %v1157 = vpop.f32.mrb[0].mxu0
    %v1158 = vadd.f32 %v396, %v1157
    %v1159 = vpop.f32.mrb[0].mxu0
    %v1160 = vadd.f32 %v400, %v1159
    %v1161 = vpop.f32.mrb[0].mxu0
    %v1162 = vpop.f32.mrb[0].mxu0
    %1163 = vdwg.mxu0
    %1164 = vmatprep.subr.bf16.mxu0 %v852
    %1165 = vmatpush1.bf16.msra.mxu0 %v851
    %1166 = vmatprep.subr.bf16.mxu0 %v856
    %1167 = vmatpush1.bf16.msra.mxu0 %v855
    %1168 = vmatprep.subr.bf16.mxu0 %v860
    %1169 = vmatpush1.bf16.msra.mxu0 %v859
    %1170 = vmatprep.subr.bf16.mxu0 %v864
    %1171 = vmatpush1.bf16.msra.mxu0 %v863
    %1172 = vmatprep.subr.bf16.mxu0 %v868
    %1173 = vmatpush1.bf16.msra.mxu0 %v867
    %1174 = vmatprep.subr.bf16.mxu0 %v872
    %1175 = vmatpush1.bf16.msra.mxu0 %v871
    %1176 = vmatprep.subr.bf16.mxu0 %v876
    %1177 = vmatpush1.bf16.msra.mxu0 %v875
    %1178 = vmatprep.subr.bf16.mxu0 %v880
    %1179 = vmatpush1.bf16.msra.mxu0 %v879
    %1180 = vmatprep.subr.bf16.mxu0 %v884
    %1181 = vmatpush1.bf16.msra.mxu0 %v883
    %1182 = vmatprep.subr.bf16.mxu0 %v888
    %1183 = vmatpush1.bf16.msra.mxu0 %v887
    %1184 = vmatprep.subr.bf16.mxu0 %v892
    %1185 = vmatpush1.bf16.msra.mxu0 %v891
    %1186 = vmatprep.subr.bf16.mxu0 %v896
    %1187 = vmatpush1.bf16.msra.mxu0 %v895
    %1188 = vmatprep.subr.bf16.mxu0 %v900
    %1189 = vmatpush1.bf16.msra.mxu0 %v899
    %1190 = vmatprep.subr.bf16.mxu0 %v904
    %1191 = vmatpush1.bf16.msra.mxu0 %v903
    %1192 = vmatprep.subr.bf16.mxu0 %v908
    %1193 = vmatpush1.bf16.msra.mxu0 %v907
    %1194 = vmatprep.subr.bf16.mxu0 %v912
    %1195 = vmatpush1.bf16.msra.mxu0 %v911
    %1196 = vmatprep.mubr.bf16.mxu0 %v236
    %1197 = vmatmul.mubr.bf16.gmra.mrb[0].mxu0 %v235
    %v1198 = vpop.f32.mrb[0].mxu0
    %v1199 = vadd.f32 %v1158, %v1198
    %v1200 = vpop.f32.mrb[0].mxu0
    %v1201 = vadd.f32 %v1160, %v1200
    %v1202 = vpop.f32.mrb[0].mxu0
    %v1203 = vpop.f32.mrb[0].mxu0
    %1204 = vdwg.mxu0
    %v1205 = vmax.f32 %v1117, 0.0
    %v1206 = vmax.f32 %v1119, 0.0
    %v1207 = vmax.f32 %v1199, 0.0
    %v1208 = vmax.f32 %v1201, 0.0
    %v1209 = vpack.c.bf16 %v1205, %v1205
    %v1210 = vpack.c.bf16 %v1206, %v1206
    %v1211 = vpack.c.bf16 %v1207, %v1207
    %v1212 = vpack.c.bf16 %v1208, %v1208
    %v1213 = vld [vmem:[#allocation8] sm:$0xf]
    %v1214 = vld [vmem:[#allocation8 + $0x4] sm:$0xf]
    %v1215 = vld [vmem:[#allocation8 + $0x8] sm:$0xf]
    %v1216 = vld [vmem:[#allocation8 + $0xc] sm:$0xf]
    %v1217 = vld [vmem:[#allocation8 + $0x10] sm:$0xf]
    %v1218 = vld [vmem:[#allocation8 + $0x14] sm:$0xf]
    %v1219 = vld [vmem:[#allocation8 + $0x18] sm:$0xf]
    %v1220 = vld [vmem:[#allocation8 + $0x1c] sm:$0xf]
    %v1221 = vld [vmem:[#allocation8 + $0x20] sm:$0xf]
    %v1222 = vld [vmem:[#allocation8 + $0x24] sm:$0xf]
    %v1223 = vld [vmem:[#allocation8 + $0x28] sm:$0xf]
    %v1224 = vld [vmem:[#allocation8 + $0x2c] sm:$0xf]
    %v1225 = vld [vmem:[#allocation8 + $0x30] sm:$0xf]
    %v1226 = vld [vmem:[#allocation8 + $0x34] sm:$0xf]
    %v1227 = vld [vmem:[#allocation8 + $0x38] sm:$0xf]
    %v1228 = vld [vmem:[#allocation8 + $0x3c] sm:$0xf]
    %v1229 = vld [vmem:[#allocation8 + $0x40] sm:$0xf]
    %v1230 = vld [vmem:[#allocation8 + $0x44] sm:$0xf]
    %v1231 = vld [vmem:[#allocation8 + $0x48] sm:$0xf]
    %v1232 = vld [vmem:[#allocation8 + $0x4c] sm:$0xf]
    %v1233 = vld [vmem:[#allocation8 + $0x50] sm:$0xf]
    %v1234 = vld [vmem:[#allocation8 + $0x54] sm:$0xf]
    %v1235 = vld [vmem:[#allocation8 + $0x58] sm:$0xf]
    %v1236 = vld [vmem:[#allocation8 + $0x5c] sm:$0xf]
    %v1237 = vld [vmem:[#allocation8 + $0x60] sm:$0xf]
    %v1238 = vld [vmem:[#allocation8 + $0x64] sm:$0xf]
    %v1239 = vld [vmem:[#allocation8 + $0x68] sm:$0xf]
    %v1240 = vld [vmem:[#allocation8 + $0x6c] sm:$0xf]
    %v1241 = vld [vmem:[#allocation8 + $0x70] sm:$0xf]
    %v1242 = vld [vmem:[#allocation8 + $0x74] sm:$0xf]
    %v1243 = vld [vmem:[#allocation8 + $0x78] sm:$0xf]
    %v1244 = vld [vmem:[#allocation8 + $0x7c] sm:$0xf]
    %v1245 = vld [vmem:[#allocation8 + $0x80] sm:$0xf]
    %v1246 = vld [vmem:[#allocation8 + $0x84] sm:$0xf]
    %v1247 = vld [vmem:[#allocation8 + $0x88] sm:$0xf]
    %v1248 = vld [vmem:[#allocation8 + $0x8c] sm:$0xf]
    %v1249 = vld [vmem:[#allocation8 + $0x90] sm:$0xf]
    %v1250 = vld [vmem:[#allocation8 + $0x94] sm:$0xf]
    %v1251 = vld [vmem:[#allocation8 + $0x98] sm:$0xf]
    %v1252 = vld [vmem:[#allocation8 + $0x9c] sm:$0xf]
    %v1253 = vld [vmem:[#allocation8 + $0xa0] sm:$0xf]
    %v1254 = vld [vmem:[#allocation8 + $0xa4] sm:$0xf]
    %v1255 = vld [vmem:[#allocation8 + $0xa8] sm:$0xf]
    %v1256 = vld [vmem:[#allocation8 + $0xac] sm:$0xf]
    %v1257 = vld [vmem:[#allocation8 + $0xb0] sm:$0xf]
    %v1258 = vld [vmem:[#allocation8 + $0xb4] sm:$0xf]
    %v1259 = vld [vmem:[#allocation8 + $0xb8] sm:$0xf]
    %v1260 = vld [vmem:[#allocation8 + $0xbc] sm:$0xf]
    %v1261 = vld [vmem:[#allocation8 + $0xc0] sm:$0xf]
    %v1262 = vld [vmem:[#allocation8 + $0xc4] sm:$0xf]
    %v1263 = vld [vmem:[#allocation8 + $0xc8] sm:$0xf]
    %v1264 = vld [vmem:[#allocation8 + $0xcc] sm:$0xf]
    %v1265 = vld [vmem:[#allocation8 + $0xd0] sm:$0xf]
    %v1266 = vld [vmem:[#allocation8 + $0xd4] sm:$0xf]
    %v1267 = vld [vmem:[#allocation8 + $0xd8] sm:$0xf]
    %v1268 = vld [vmem:[#allocation8 + $0xdc] sm:$0xf]
    %v1269 = vld [vmem:[#allocation8 + $0xe0] sm:$0xf]
    %v1270 = vld [vmem:[#allocation8 + $0xe4] sm:$0xf]
    %v1271 = vld [vmem:[#allocation8 + $0xe8] sm:$0xf]
    %v1272 = vld [vmem:[#allocation8 + $0xec] sm:$0xf]
    %v1273 = vld [vmem:[#allocation8 + $0xf0] sm:$0xf]
    %v1274 = vld [vmem:[#allocation8 + $0xf4] sm:$0xf]
    %v1275 = vld [vmem:[#allocation8 + $0xf8] sm:$0xf]
    %v1276 = vld [vmem:[#allocation8 + $0xfc] sm:$0xf]
    %v1277 = vlaneseq
    %v1278 = vshrl.u32 %v1277, 7
    %v1279 = vsub.s32 0, %v1278
    %v1280 = vrot.slane %v81, %v1279
    %v1345 = vunpack.c.l.b16 %v1213
    %v1346 = vunpack.c.l.b16 %v1214
    %v1347 = vunpack.c.l.b16 %v1215
    %v1348 = vunpack.c.l.b16 %v1216
    %v1349 = vunpack.c.l.b16 %v1217
    %v1350 = vunpack.c.l.b16 %v1218
    %v1351 = vunpack.c.l.b16 %v1219
    %v1352 = vunpack.c.l.b16 %v1220
    %v1353 = vunpack.c.l.b16 %v1221
    %v1354 = vunpack.c.l.b16 %v1222
    %v1355 = vunpack.c.l.b16 %v1223
    %v1356 = vunpack.c.l.b16 %v1224
    %v1357 = vunpack.c.l.b16 %v1225
    %v1358 = vunpack.c.l.b16 %v1226
    %v1359 = vunpack.c.l.b16 %v1227
    %v1360 = vunpack.c.l.b16 %v1228
    %v1361 = vunpack.c.l.b16 %v1229
    %v1362 = vunpack.c.l.b16 %v1230
    %v1363 = vunpack.c.l.b16 %v1231
    %v1364 = vunpack.c.l.b16 %v1232
    %v1365 = vunpack.c.l.b16 %v1233
    %v1366 = vunpack.c.l.b16 %v1234
    %v1367 = vunpack.c.l.b16 %v1235
    %v1368 = vunpack.c.l.b16 %v1236
    %v1369 = vunpack.c.l.b16 %v1237
    %v1370 = vunpack.c.l.b16 %v1238
    %v1371 = vunpack.c.l.b16 %v1239
    %v1372 = vunpack.c.l.b16 %v1240
    %v1373 = vunpack.c.l.b16 %v1241
    %v1374 = vunpack.c.l.b16 %v1242
    %v1375 = vunpack.c.l.b16 %v1243
    %v1376 = vunpack.c.l.b16 %v1244
    %v1377 = vunpack.c.l.b16 %v1245
    %v1378 = vunpack.c.l.b16 %v1246
    %v1379 = vunpack.c.l.b16 %v1247
    %v1380 = vunpack.c.l.b16 %v1248
    %v1381 = vunpack.c.l.b16 %v1249
    %v1382 = vunpack.c.l.b16 %v1250
    %v1383 = vunpack.c.l.b16 %v1251
    %v1384 = vunpack.c.l.b16 %v1252
    %v1385 = vunpack.c.l.b16 %v1253
    %v1386 = vunpack.c.l.b16 %v1254
    %v1387 = vunpack.c.l.b16 %v1255
    %v1388 = vunpack.c.l.b16 %v1256
    %v1389 = vunpack.c.l.b16 %v1257
    %v1390 = vunpack.c.l.b16 %v1258
    %v1391 = vunpack.c.l.b16 %v1259
    %v1392 = vunpack.c.l.b16 %v1260
    %v1393 = vunpack.c.l.b16 %v1261
    %v1394 = vunpack.c.l.b16 %v1262
    %v1395 = vunpack.c.l.b16 %v1263
    %v1396 = vunpack.c.l.b16 %v1264
    %v1397 = vunpack.c.l.b16 %v1265
    %v1398 = vunpack.c.l.b16 %v1266
    %v1399 = vunpack.c.l.b16 %v1267
    %v1400 = vunpack.c.l.b16 %v1268
    %v1401 = vunpack.c.l.b16 %v1269
    %v1402 = vunpack.c.l.b16 %v1270
    %v1403 = vunpack.c.l.b16 %v1271
    %v1404 = vunpack.c.l.b16 %v1272
    %v1405 = vunpack.c.l.b16 %v1273
    %v1406 = vunpack.c.l.b16 %v1274
    %v1407 = vunpack.c.l.b16 %v1275
    %v1408 = vunpack.c.l.b16 %v1276
    %v1409 = vpack.c.b16 %v1346, %v1345
    %v1410 = vpack.c.b16 %v1348, %v1347
    %v1411 = vpack.c.b16 %v1350, %v1349
    %v1412 = vpack.c.b16 %v1352, %v1351
    %v1413 = vpack.c.b16 %v1354, %v1353
    %v1414 = vpack.c.b16 %v1356, %v1355
    %v1415 = vpack.c.b16 %v1358, %v1357
    %v1416 = vpack.c.b16 %v1360, %v1359
    %v1417 = vpack.c.b16 %v1362, %v1361
    %v1418 = vpack.c.b16 %v1364, %v1363
    %v1419 = vpack.c.b16 %v1366, %v1365
    %v1420 = vpack.c.b16 %v1368, %v1367
    %v1421 = vpack.c.b16 %v1370, %v1369
    %v1422 = vpack.c.b16 %v1372, %v1371
    %v1423 = vpack.c.b16 %v1374, %v1373
    %v1424 = vpack.c.b16 %v1376, %v1375
    %v1425 = vpack.c.b16 %v1378, %v1377
    %v1426 = vpack.c.b16 %v1380, %v1379
    %v1427 = vpack.c.b16 %v1382, %v1381
    %v1428 = vpack.c.b16 %v1384, %v1383
    %v1429 = vpack.c.b16 %v1386, %v1385
    %v1430 = vpack.c.b16 %v1388, %v1387
    %v1431 = vpack.c.b16 %v1390, %v1389
    %v1432 = vpack.c.b16 %v1392, %v1391
    %v1433 = vpack.c.b16 %v1394, %v1393
    %v1434 = vpack.c.b16 %v1396, %v1395
    %v1435 = vpack.c.b16 %v1398, %v1397
    %v1436 = vpack.c.b16 %v1400, %v1399
    %v1437 = vpack.c.b16 %v1402, %v1401
    %v1438 = vpack.c.b16 %v1404, %v1403
    %v1439 = vpack.c.b16 %v1406, %v1405
    %v1440 = vpack.c.b16 %v1408, %v1407
    %1473 = vmatprep.subr.bf16.mxu0 0
    %1474 = vmatpush1.bf16.msra.mxu0 %v1409
    %1475 = vmatprep.subr.bf16.mxu0 0
    %1476 = vmatpush1.bf16.msra.mxu0 %v1410
    %1477 = vmatprep.subr.bf16.mxu0 0
    %1478 = vmatpush1.bf16.msra.mxu0 %v1411
    %1479 = vmatprep.subr.bf16.mxu0 0
    %1480 = vmatpush1.bf16.msra.mxu0 %v1412
    %1481 = vmatprep.subr.bf16.mxu0 0
    %1482 = vmatpush1.bf16.msra.mxu0 %v1413
    %1483 = vmatprep.subr.bf16.mxu0 0
    %1484 = vmatpush1.bf16.msra.mxu0 %v1414
    %1485 = vmatprep.subr.bf16.mxu0 0
    %1486 = vmatpush1.bf16.msra.mxu0 %v1415
    %1487 = vmatprep.subr.bf16.mxu0 0
    %1488 = vmatpush1.bf16.msra.mxu0 %v1416
    %1489 = vmatprep.subr.bf16.mxu0 0
    %1490 = vmatpush1.bf16.msra.mxu0 %v1417
    %1491 = vmatprep.subr.bf16.mxu0 0
    %1492 = vmatpush1.bf16.msra.mxu0 %v1418
    %1493 = vmatprep.subr.bf16.mxu0 0
    %1494 = vmatpush1.bf16.msra.mxu0 %v1419
    %1495 = vmatprep.subr.bf16.mxu0 0
    %1496 = vmatpush1.bf16.msra.mxu0 %v1420
    %1497 = vmatprep.subr.bf16.mxu0 0
    %1498 = vmatpush1.bf16.msra.mxu0 %v1421
    %1499 = vmatprep.subr.bf16.mxu0 0
    %1500 = vmatpush1.bf16.msra.mxu0 %v1422
    %1501 = vmatprep.subr.bf16.mxu0 0
    %1502 = vmatpush1.bf16.msra.mxu0 %v1423
    %1503 = vmatprep.subr.bf16.mxu0 0
    %1504 = vmatpush1.bf16.msra.mxu0 %v1424
    %1505 = vmatprep.mubr.bf16.mxu0 %v1210
    %1506 = vmatmul.mubr.bf16.gmra.mrb[0].mxu0 %v1209
    %v1507 = vpop.f32.mrb[0].mxu0
    %v1508 = vadd.f32 %v1280, %v1507
    %v1509 = vpop.f32.mrb[0].mxu0
    %v1510 = vpop.f32.mrb[0].mxu0
    %v1511 = vpop.f32.mrb[0].mxu0
    %1512 = vdwg.mxu0
    %1513 = vmatprep.subr.bf16.mxu0 0
    %1514 = vmatpush1.bf16.msra.mxu0 %v1425
    %1515 = vmatprep.subr.bf16.mxu0 0
    %1516 = vmatpush1.bf16.msra.mxu0 %v1426
    %1517 = vmatprep.subr.bf16.mxu0 0
    %1518 = vmatpush1.bf16.msra.mxu0 %v1427
    %1519 = vmatprep.subr.bf16.mxu0 0
    %1520 = vmatpush1.bf16.msra.mxu0 %v1428
    %1521 = vmatprep.subr.bf16.mxu0 0
    %1522 = vmatpush1.bf16.msra.mxu0 %v1429
    %1523 = vmatprep.subr.bf16.mxu0 0
    %1524 = vmatpush1.bf16.msra.mxu0 %v1430
    %1525 = vmatprep.subr.bf16.mxu0 0
    %1526 = vmatpush1.bf16.msra.mxu0 %v1431
    %1527 = vmatprep.subr.bf16.mxu0 0
    %1528 = vmatpush1.bf16.msra.mxu0 %v1432
    %1529 = vmatprep.subr.bf16.mxu0 0
    %1530 = vmatpush1.bf16.msra.mxu0 %v1433
    %1531 = vmatprep.subr.bf16.mxu0 0
    %1532 = vmatpush1.bf16.msra.mxu0 %v1434
    %1533 = vmatprep.subr.bf16.mxu0 0
    %1534 = vmatpush1.bf16.msra.mxu0 %v1435
    %1535 = vmatprep.subr.bf16.mxu0 0
    %1536 = vmatpush1.bf16.msra.mxu0 %v1436
    %1537 = vmatprep.subr.bf16.mxu0 0
    %1538 = vmatpush1.bf16.msra.mxu0 %v1437
    %1539 = vmatprep.subr.bf16.mxu0 0
    %1540 = vmatpush1.bf16.msra.mxu0 %v1438
    %1541 = vmatprep.subr.bf16.mxu0 0
    %1542 = vmatpush1.bf16.msra.mxu0 %v1439
    %1543 = vmatprep.subr.bf16.mxu0 0
    %1544 = vmatpush1.bf16.msra.mxu0 %v1440
    %1545 = vmatprep.mubr.bf16.mxu0 %v1212
    %1546 = vmatmul.mubr.bf16.gmra.mrb[0].mxu0 %v1211
    %v1547 = vpop.f32.mrb[0].mxu0
    %v1548 = vadd.f32 %v1508, %v1547
    %v1549 = vpop.f32.mrb[0].mxu0
    %v1550 = vpop.f32.mrb[0].mxu0
    %v1551 = vpop.f32.mrb[0].mxu0
    %1552 = vdwg.mxu0
    %v1553 = vtanh.pop %v1548
    %v1554 = vlaneseq
    %v1555 = vshrl.u32 %v1554, 7
    %v1556 = vsub.s32 1, %v1555
    %v1557 = vrot.slane %v81, %v1556
    %v1558 = vmul.f32 %v1553, %v1557
    %v1559 = vlaneseq
    %v1560 = vshrl.u32 %v1559, 7
    %v1561 = vsub.s32 2, %v1560
    %v1562 = vrot.slane %v81, %v1561
    %v1563 = vmul.f32 %v1548, %v1562
    %v1564 = vadd.f32 %v1558, %v1563
    %v1565 = vlaneseq
    %v1566 = vshrl.u32 %v1565, 7
    %v1567 = vsub.s32 3, %v1566
    %v1568 = vrot.slane %v81, %v1567
    %v1569 = vadd.f32 %v1564, %v1568
    %v1570 = vpack.c.bf16 %v1569, %v1569
    %1571 = vst [vmem:[#allocation10] sm:$0xf] %v1570
    // Predicated region
    $region42: #{tpu_custom_call.1} parent=1 // pred_check
      _
    $region43: #{tpu_custom_call.1} parent=1 // pred_check_branch
      %1573 = sbr.rel (0) target = $region45
    $region44: #{tpu_custom_call.1} parent=1 // pred_region
      %s1575 = ssub.s32 64, 64
      %1576 = vsyncadd [#allocation4], %s1575
      %s1578 = sshll.u32 [#allocation10], 4
      %s1579 = int_to_ptr.vmem [resolvable:$true] %s1578
      %1581 = dma.vmem_to_hbm [thread:$0]  %s1579, 64, %s6, [#allocation4]
    $region45: #{tpu_custom_call.1} parent=1 // pred_fallthru
      _
    // Predicated region
    $region46: #{tpu_custom_call.1} parent=1 // pred_check
      _
    $region47: #{tpu_custom_call.1} parent=1 // pred_check_branch
      %1583 = sbr.rel (0) target = $region49
    $region48: #{tpu_custom_call.1} parent=1 // pred_region
      %1584 = dma.done [#allocation4], 64
    $region49: #{tpu_custom_call.1} parent=1 // pred_fallthru
      _
    %1585 = vsyncpa [#allocation3], 1
    %1586 = vsyncpa [#allocation6], 1
    %1587 = vsyncpa [#allocation9], 1
    %1588 = vsyncpa [#allocation4], 1

</llo_original>
